<compile_context>
chip_gen: v5e
topology: v5e:2x2
jax: 0.10.0
libtpu: 0.0.40
codegen_flags: <defaults>
</compile_context>

<pallas_src>
import jax
import jax.numpy as jnp
from jax.experimental import pallas as pl
from jax.experimental.pallas import tpu as pltpu


# ----------------------------- kernels --------------------------------------


def _drop_path_kernel_batched(mask_ref, x_ref, o_ref):
    # mask_ref: (TB, 1, 1) float32 VMEM  (per-sample scaled keep mask)
    # x_ref:    (TB, rows, cols) VMEM tile spanning several samples
    # o_ref:    (TB, rows, cols) output tile
    o_ref[...] = (x_ref[...] * mask_ref[...]).astype(o_ref.dtype)


def _drop_path_kernel_tiled(mask_ref, x_ref, o_ref):
    # mask_ref: (B,) float32 scaled keep mask, resident in SMEM (scalar read)
    # x_ref:    (1, TR, TC) VMEM tile of the current sample
    # o_ref:    (1, TR, TC) output tile
    b = pl.program_id(0)
    m = mask_ref[b]  # scalar f32
    o_ref[...] = (x_ref[...] * m).astype(o_ref.dtype)


# ----------------------------- tiling helpers --------------------------------


def _sublane_pack(itemsize):
    # sublane packing per dtype (f32 -> 8, bf16 -> 16, int8/fp8 -> 32)
    return {4: 8, 2: 16, 1: 32}.get(itemsize, 8)


def _tpu_block_target_bytes():
    """Generation-aware per-block byte target for this streaming kernel."""
    try:
        info = pltpu.get_tpu_info()
        vmem = getattr(info, "vmem_capacity_bytes", 64 * 1024 * 1024)
    except Exception:
        vmem = 64 * 1024 * 1024
    # 128-MiB-VMEM parts (v5e/v6e): 8 MiB blocks; 64-MiB parts (v7x): 4 MiB.
    return 8 * 1024 * 1024 if vmem >= 100 * 1024 * 1024 else 4 * 1024 * 1024


def _lane_dense_layout(shape):
    """Flatten per-sample features to (rows, cols) with cols lane-dense."""
    feat = 1
    for s in shape[1:]:
        feat *= s
    last = shape[-1] if len(shape) > 1 else 1
    if len(shape) > 1 and last % 128 == 0:
        return feat // last, last
    for c in (1024, 512, 256, 128):
        if feat % c == 0:
            return feat // c, c
    # TODO(synk): sub-128 lane widths fall back to a single full-extent row
    # (masked partial stores); pad the hidden dim in the caller for peak BW.
    return 1, feat


# ----------------------------- wrapper ---------------------------------------


def drop_path(x, drop_prob, training, key, *, donate=False, block_target_bytes=None):
    """JAX/Pallas equivalent of timm's drop_path used by DropPath.forward."""
    if drop_prob is None or drop_prob == 0.0 or not training:
        return x
    if not (0.0 <= drop_prob < 1.0):
        raise ValueError(f"drop_prob must be in [0, 1); got {drop_prob}")

    keep_prob = 1.0 - drop_prob
    orig_shape = x.shape
    B = orig_shape[0]
    itemsize = jnp.dtype(x.dtype).itemsize

    # Per-sample keep mask, timm rule: floor(keep_prob + U[0,1)) in {0, 1}.
    # Mask and 1/keep_prob rescale are computed entirely in float32.
    u = jax.random.uniform(key, (B,), dtype=jnp.float32)
    scaled_mask = jnp.floor(jnp.float32(keep_prob) + u) / jnp.float32(keep_prob)

    rows, cols = _lane_dense_layout(orig_shape)
    x3 = x.reshape(B, rows, cols)
    per_sample = rows * cols * itemsize
    target = int(block_target_bytes or _tpu_block_target_bytes())

    if per_sample <= target:
        # ---- Path A: multi-sample blocks (TB, rows, cols), mask in VMEM ----
        tb = max(1, min(B, target // max(1, per_sample)))
        if B >= 2 and tb >= B:
            tb = pl.cdiv(B, 2)  # keep >= 2 grid steps (feed both v7x TCs)
        grid = (pl.cdiv(B, tb),)
        block_bytes = tb * per_sample
        kernel = _drop_path_kernel_batched
        mask_arg = scaled_mask.reshape(B, 1, 1)
        in_specs = [
            pl.BlockSpec((tb, 1, 1), lambda b: (b, 0, 0)),
            pl.BlockSpec((tb, rows, cols), lambda b: (b, 0, 0)),
        ]
        out_spec = pl.BlockSpec((tb, rows, cols), lambda b: (b, 0, 0))
        dim_sem = ("parallel",)
        mask_bytes = B * 4
    else:
        # ---- Path B: per-sample tiles (1, TR, TC), scalar mask from SMEM ----
        sub = _sublane_pack(itemsize)
        tc = cols
        if cols % 128 == 0 and cols * sub * itemsize > target:
            # huge last dim: tile it in multiples of 128 to bound VMEM use
            tc = (target // (sub * itemsize)) // 128 * 128
            tc = min(cols, max(128, tc))
        tr = max(1, target // max(1, tc * itemsize))
        if tr >= rows:
            tr = rows
        else:
            tr = min(rows, max(sub, (tr // sub) * sub))
        grid = (B, pl.cdiv(rows, tr), pl.cdiv(cols, tc))
        block_bytes = tr * tc * itemsize
        kernel = _drop_path_kernel_tiled
        mask_arg = scaled_mask  # (B,) f32, whole array in SMEM
        in_specs = [
            pl.BlockSpec(memory_space=pltpu.MemorySpace.SMEM),
            pl.BlockSpec((1, tr, tc), lambda b, r, c: (b, r, c)),
        ]
        out_spec = pl.BlockSpec((1, tr, tc), lambda b, r, c: (b, r, c))
        dim_sem = ("parallel", "parallel", "parallel")
        mask_bytes = B * 4

    # Right-size the VMEM request: double-buffered in + out blocks + margin.
    vmem_limit = int(max(4 * block_bytes + (2 << 20), 8 << 20))

    out3 = pl.pallas_call(
        kernel,
        out_shape=jax.ShapeDtypeStruct((B, rows, cols), x.dtype),
        grid=grid,
        in_specs=in_specs,
        out_specs=out_spec,
        compiler_params=pltpu.CompilerParams(
            dimension_semantics=dim_sem,
            vmem_limit_bytes=vmem_limit,
        ),
        cost_estimate=pl.CostEstimate(
            flops=x.size,
            transcendentals=0,
            bytes_accessed=2 * x.size * itemsize + mask_bytes,
        ),
        input_output_aliases=({1: 0} if donate else {}),
    )(mask_arg, x3)

    return out3.reshape(orig_shape) if out3.shape != orig_shape else out3


class DropPath:
    """Drop paths (Stochastic Depth) per sample, mirroring the PyTorch module."""

    def __init__(self, drop_prob=None):
        self.drop_prob = drop_prob
        self.training = True

    def __call__(self, x, key, **kw):
        return drop_path(x, self.drop_prob, self.training, key, **kw)

    def extra_repr(self):
        return "p={}".format(self.drop_prob)


# ----------------------------- self-test --------------------------------------


def _ref_drop_path(x, drop_prob, key):
    keep_prob = 1.0 - drop_prob
    B = x.shape[0]
    u = jax.random.uniform(key, (B,), dtype=jnp.float32)
    mask = jnp.floor(jnp.float32(keep_prob) + u) / jnp.float32(keep_prob)
    mask = mask.reshape((B,) + (1,) * (x.ndim - 1))
    return (x * mask).astype(x.dtype)


if __name__ == "__main__":
    root = jax.random.PRNGKey(0)
    k_x, k_mask, k_x2 = jax.random.split(root, 3)

    module = DropPath(drop_prob=0.25)
    module.training = True

    # Case 1: ViT-like (B, N, D) f32 -> multi-sample path A.
    B, N, D = 2, 8, 128
    x = jax.random.normal(k_x, (B, N, D), dtype=jnp.float32)
    out = jax.block_until_ready(module(x, k_mask))
    ref = _ref_drop_path(x, module.drop_prob, k_mask)
    assert out.shape == x.shape and out.dtype == x.dtype
    assert jnp.allclose(out, ref, atol=1e-6), "f32 path-A mismatch vs reference"

    # Case 2: same shape, bf16 (f32 mask * bf16 tile, dtype-aware packing).
    x_bf16 = x.astype(jnp.bfloat16)
    out_bf16 = jax.block_until_ready(module(x_bf16, k_mask))
    ref_bf16 = _ref_drop_path(x_bf16, module.drop_prob, k_mask)
    assert out_bf16.dtype == jnp.bfloat16
    assert jnp.allclose(out_bf16.astype(jnp.float32), ref_bf16.astype(jnp.float32), atol=1e-2)

    # Case 3: force the token-tiled SMEM-mask path (path B) with a tiny target.
    out_b = jax.block_until_ready(module(x, k_mask, block_target_bytes=2048))
    assert jnp.allclose(out_b, ref, atol=1e-6), "path-B mismatch vs reference"

    # Case 4: conv-like 4-D (B, C, H, W) exercises flatten + lane-dense layout.
    x4 = jax.random.normal(k_x2, (2, 4, 16, 16), dtype=jnp.float32)
    out4 = jax.block_until_ready(module(x4, k_mask))
    ref4 = _ref_drop_path(x4, module.drop_prob, k_mask)
    assert out4.shape == x4.shape
    assert jnp.allclose(out4, ref4, atol=1e-6), "4-D path mismatch vs reference"

    # Case 5: last dim not a multiple of 128 (lane-dense regroup to cols=128).
    x5 = jax.random.normal(k_x2, (2, 6, 64), dtype=jnp.float32)
    out5 = jax.block_until_ready(module(x5, k_mask))
    ref5 = _ref_drop_path(x5, module.drop_prob, k_mask)
    assert jnp.allclose(out5, ref5, atol=1e-6), "non-128 D mismatch vs reference"

    # Case 6: eval mode / drop_prob=0 returns input unchanged (no kernel launch).
    module.training = False
    out_eval = jax.block_until_ready(module(x, k_mask))
    assert jnp.array_equal(out_eval, x)

    print("KERNEL_OK")
</pallas_src>

<mosaic_0001>
module attributes {stable_mosaic.version = 11 : i64} {
  func.func @_drop_path_kernel_batched(%arg0: i32, %arg1: memref<1x1x1xf32, #tpu.memory_space<vmem>>, %arg2: memref<1x8x128xf32, #tpu.memory_space<vmem>>, %arg3: memref<1x8x128xf32, #tpu.memory_space<vmem>>) attributes {dimension_semantics = [#tpu.dimension_semantics<parallel>], iteration_bounds = array<i64: 2>, scalar_prefetch = 0 : i64, scratch_operands = 0 : i64, tpu.core_type = #tpu.core_type<tc>, window_params = [{transform_indices = @transform_0, window_bounds = array<i64: 1, 1, 1>}, {transform_indices = @transform_1, window_bounds = array<i64: 1, 8, 128>}, {transform_indices = @transform_2, window_bounds = array<i64: 1, 8, 128>}]} {
    %c0 = arith.constant 0 : index
    %c0_0 = arith.constant 0 : index
    %c0_1 = arith.constant 0 : index
    %0 = vector.load %arg2[%c0, %c0_0, %c0_1] : memref<1x8x128xf32, #tpu.memory_space<vmem>>, vector<1x8x128xf32>
    %c0_2 = arith.constant 0 : index
    %c0_3 = arith.constant 0 : index
    %c0_4 = arith.constant 0 : index
    %1 = vector.load %arg1[%c0_2, %c0_3, %c0_4] : memref<1x1x1xf32, #tpu.memory_space<vmem>>, vector<1x1x1xf32>
    %2 = vector.broadcast %1 : vector<1x1x1xf32> to vector<1x8x128xf32>
    %3 = arith.mulf %0, %2 : vector<1x8x128xf32>
    %c0_5 = arith.constant 0 : index
    %c0_6 = arith.constant 0 : index
    %c0_7 = arith.constant 0 : index
    %4 = vector.load %arg3[%c0_5, %c0_6, %c0_7] : memref<1x8x128xf32, #tpu.memory_space<vmem>>, vector<1x8x128xf32>
    tpu.vector_store %arg3[%c0_5, %c0_6, %c0_7], %3 {strides = array<i32>} : memref<1x8x128xf32, #tpu.memory_space<vmem>>, vector<1x8x128xf32>,
    return
  }
  func.func @transform_0(%arg0: i32) -> (i32, i32, i32) {
    %c0_i32 = arith.constant 0 : i32
    %c0_i32_0 = arith.constant 0 : i32
    %c0_i32_1 = arith.constant 0 : i32
    return %arg0, %c0_i32, %c0_i32_0 : i32, i32, i32
  }
  func.func @transform_1(%arg0: i32) -> (i32, i32, i32) {
    %c0_i32 = arith.constant 0 : i32
    %c0_i32_0 = arith.constant 0 : i32
    %c0_i32_1 = arith.constant 0 : i32
    return %arg0, %c0_i32, %c0_i32_0 : i32, i32, i32
  }
  func.func @transform_2(%arg0: i32) -> (i32, i32, i32) {
    %c0_i32 = arith.constant 0 : i32
    %c0_i32_0 = arith.constant 0 : i32
    %c0_i32_1 = arith.constant 0 : i32
    return %arg0, %c0_i32, %c0_i32_0 : i32, i32, i32
  }
}

</mosaic_0001>

<llo_original>
// kernel: tpu_custom_call.1
$region0: #{tpu_custom_call.1}
  #allocation0 [shape = 'u32[]', space=smem, size = 0x4, offset = 0x4, fixed_abs, tag = 'smem constant byte address 0x4 - core index']
  #allocation1 [shape = 'u32[72,128]{1,0:T(1,128)}', space=vmem, size = 0x9000, scoped, tag = 'internal scratch']
  %s0 = inlined_call_operand.vmem [shape: f32[2,1,1], index: 0, kind: input, shape index: {}]
  %s1 = inlined_call_operand.hbm [shape: f32[2,8,128], index: 1, kind: input, shape index: {}]
  %s2 = inlined_call_operand.hbm [shape: f32[2,8,128], index: 2, kind: output, shape index: {}]
  %s3 = sld [smem:[#allocation0]]
  $region45: #{tpu_custom_call.1} parent=0
    _
  %s5 = ssub.s32 1, %s3
  %s6 = scalar_select 0, %s5, %s3
  $region1: #{tpu_custom_call.1} parent=0
    #allocation2 [shape = 'u8[8192]{0}', space=vmem, size = 0x2000, scoped, tag = 'input window, operand 1']
    #allocation3 [shape = 's32[2]{0}', space=sflag, size = 0x8, scoped, tag = 'scoped memory for tpu_custom_call.1']
    #allocation4 [shape = 's32[2]{0}', space=sflag, size = 0x8, scoped, tag = 'scoped memory for tpu_custom_call.1']
    #allocation5 [shape = 'u8[8192]{0}', space=vmem, size = 0x2000, scoped, tag = 'output window, operand 0']
    %7 = vsyncpa [#allocation3], 0
    %s8 = scalar_lea.sflag [#allocation3], 1
    %9 = vsyncpa %s8, 0
    %10 = vsyncpa [#allocation4], 0
    %s11 = scalar_lea.sflag [#allocation4], 1
    %12 = vsyncpa %s11, 0
    loop: start=0, step=1, limit=4
    $region2: #{tpu_custom_call.1} parent=1 // loop_pre_header
      _
    $region3: #{tpu_custom_call.1} parent=1 // loop_header
      %s14 = sphi 0, %s18
      %p15 = scmp.ge.s32.totalorder %s14, 4
      %s24 = sphi 0, %s26
      %s27 = sphi 0, %s24
      %s28 = sphi 0, %s27
      %s44 = sphi 0, %s28
      %s50 = sphi 0, %s52
      %s53 = sphi 0, %s50
      %s54 = sphi 0, %s53
      %s70 = sphi 0, %s54
      %s76 = sphi 0, %s78
      %s79 = sphi 0, %s76
      %s80 = sphi 0, %s79
      %s96 = sphi 0, %s80
    $region4: #{tpu_custom_call.1} parent=1 // loop_header_branch
      %17 = sbr.rel (%p15) target = $region8
    $region5: #{tpu_custom_call.1} parent=1 // loop_body
      %s19 = ssub.s32 %s14, 1
      %s20 = ssub.s32 %s14, 2
      %s21 = sadd.s32 %s14, 1
      %s22 = ssub.s32 %s14, %s21
      %p23 = scmp.eq.s32.totalorder %s22, 0
      %s25 = sadd.s32 %s24, 1
      %s26 = scalar_select %p23, %s24, %s25
      %p29 = pneg %p23
      %p30 = scmp.eq.s32.totalorder %s14, 1
      %p31 = por %p29, %p30
      %p32 = scmp.ne.s32.totalorder %s24, %s27
      %p33 = scmp.eq.s32.totalorder %s14, 0
      %p34 = por %p32, %p33
      %p35 = scmp.ne.s32.totalorder %s24, %s27
      %p36 = scmp.eq.s32.totalorder %s19, 1
      %p37 = por %p35, %p36
      %p38 = scmp.ne.s32.totalorder %s27, %s28
      %p39 = scmp.eq.s32.totalorder %s19, 0
      %p40 = por %p38, %p39
      %p41 = scmp.ne.s32.totalorder %s27, %s28
      %p42 = scmp.eq.s32.totalorder %s20, 1
      %p43 = por %p41, %p42
      %p45 = scmp.ne.s32.totalorder %s28, %s44
      %p46 = scmp.eq.s32.totalorder %s20, 0
      %p47 = por %p45, %p46
      %s48 = ssub.s32 %s14, %s21
      %p49 = scmp.eq.s32.totalorder %s48, 0
      %s51 = sadd.s32 %s50, 1
      %s52 = scalar_select %p49, %s50, %s51
      %p55 = pneg %p49
      %p56 = scmp.eq.s32.totalorder %s14, 1
      %p57 = por %p55, %p56
      %p58 = scmp.ne.s32.totalorder %s50, %s53
      %p59 = scmp.eq.s32.totalorder %s14, 0
      %p60 = por %p58, %p59
      %p61 = scmp.ne.s32.totalorder %s50, %s53
      %p62 = scmp.eq.s32.totalorder %s19, 1
      %p63 = por %p61, %p62
      %p64 = scmp.ne.s32.totalorder %s53, %s54
      %p65 = scmp.eq.s32.totalorder %s19, 0
      %p66 = por %p64, %p65
      %p67 = scmp.ne.s32.totalorder %s53, %s54
      %p68 = scmp.eq.s32.totalorder %s20, 1
      %p69 = por %p67, %p68
      %p71 = scmp.ne.s32.totalorder %s54, %s70
      %p72 = scmp.eq.s32.totalorder %s20, 0
      %p73 = por %p71, %p72
      %s74 = ssub.s32 %s14, %s21
      %p75 = scmp.eq.s32.totalorder %s74, 0
      %s77 = sadd.s32 %s76, 1
      %s78 = scalar_select %p75, %s76, %s77
      %p81 = pneg %p75
      %p82 = scmp.eq.s32.totalorder %s14, 1
      %p83 = por %p81, %p82
      %p84 = scmp.ne.s32.totalorder %s76, %s79
      %p85 = scmp.eq.s32.totalorder %s14, 0
      %p86 = por %p84, %p85
      %p87 = scmp.ne.s32.totalorder %s76, %s79
      %p88 = scmp.eq.s32.totalorder %s19, 1
      %p89 = por %p87, %p88
      %p90 = scmp.ne.s32.totalorder %s79, %s80
      %p91 = scmp.eq.s32.totalorder %s19, 0
      %p92 = por %p90, %p91
      %p93 = scmp.ne.s32.totalorder %s79, %s80
      %p94 = scmp.eq.s32.totalorder %s20, 1
      %p95 = por %p93, %p94
      %p97 = scmp.ne.s32.totalorder %s80, %s96
      %p98 = scmp.eq.s32.totalorder %s20, 0
      %p99 = por %p97, %p98
      %p100 = scmp.le.s32.totalorder 1, %s14
      %p101 = scmp.lt.s32.totalorder %s14, 3
      %p102 = pnand %p100, %p101
      %p103 = pneg %p102
      // Predicated region
      $region9: #{tpu_custom_call.1} parent=5 // pred_check
        _
      $region10: #{tpu_custom_call.1} parent=5 // pred_check_branch
        %105 = sbr.rel (%p102) target = $region12
      $region11: #{tpu_custom_call.1} parent=5 // pred_region
        %s106 = ssub.s32 %s14, 1
      $region12: #{tpu_custom_call.1} parent=5 // pred_fallthru
        _
      %p107 = scmp.lt.s32.totalorder %s14, 2
      // Predicated region
      $region13: #{tpu_custom_call.1} parent=5 // pred_check
        %p108 = pneg %p107
      $region14: #{tpu_custom_call.1} parent=5 // pred_check_branch
        %110 = sbr.rel (%p108) target = $region16
      $region15: #{tpu_custom_call.1} parent=5 // pred_region
        // Predicated region
        $region17: #{tpu_custom_call.1} parent=15 // pred_check
          %p111 = pneg %p34
        $region18: #{tpu_custom_call.1} parent=15 // pred_check_branch
          %113 = sbr.rel (%p111) target = $region20
        $region19: #{tpu_custom_call.1} parent=15 // pred_region
          %p114 = scmp.lt.s32.totalorder %s14, 1
          %s115 = scalar_select %p114, %s14, 1
          %s116 = scalar_lea.vmem %s0, %s115
        $region20: #{tpu_custom_call.1} parent=15 // pred_fallthru
          _
        // Predicated region
        $region21: #{tpu_custom_call.1} parent=15 // pred_check
          %p117 = pneg %p60
        $region22: #{tpu_custom_call.1} parent=15 // pred_check_branch
          %119 = sbr.rel (%p117) target = $region24
        $region23: #{tpu_custom_call.1} parent=15 // pred_region
          %s120 = sand.u32 %s50, 1
          %s121 = scalar_lea.sflag [#allocation3], %s120
          %s122 = sand.u32 %s50, 1
          %s123 = smul.addr %s122, 8
          %s124 = scalar_lea.vmem [#allocation2], %s123
          %126 = vsyncadd %s121, 0
          %s127 = smul.addr %s14, 8
          %s128 = scalar_lea.hbm %s1, %s127
          %s130 = sshll.u32 %s128, 4
          %s131 = int_to_ptr.hbm [resolvable:$true] %s130
          %s132 = sshll.u32 %s124, 4
          %s133 = int_to_ptr.vmem [resolvable:$true] %s132
          %135 = dma.hbm_to_vmem [thread:$0]  %s131, 128, %s133, %s121
        $region24: #{tpu_custom_call.1} parent=15 // pred_fallthru
          _
      $region16: #{tpu_custom_call.1} parent=5 // pred_fallthru
        _
      %p136 = scmp.le.s32.totalorder 1, %s14
      %p137 = scmp.lt.s32.totalorder %s14, 3
      %p138 = pnand %p136, %p137
      %p139 = pneg %p138
      // Predicated region
      $region25: #{tpu_custom_call.1} parent=5 // pred_check
        _
      $region26: #{tpu_custom_call.1} parent=5 // pred_check_branch
        %141 = sbr.rel (%p138) target = $region28
      $region27: #{tpu_custom_call.1} parent=5 // pred_region
        %s142 = ssub.s32 %s14, 1
        %s143 = sand.u32 %s53, 1
        %s144 = scalar_lea.sflag [#allocation3], %s143
        %s145 = sand.u32 %s53, 1
        %s146 = smul.addr %s145, 8
        %s147 = scalar_lea.vmem [#allocation2], %s146
        // Predicated region
        $region29: #{tpu_custom_call.1} parent=27 // pred_check
          %p148 = pneg %p66
        $region30: #{tpu_custom_call.1} parent=27 // pred_check_branch
          %150 = sbr.rel (%p148) target = $region32
        $region31: #{tpu_custom_call.1} parent=27 // pred_region
          %152 = dma.done %s144, 128
        $region32: #{tpu_custom_call.1} parent=27 // pred_fallthru
          _
        %p153 = scmp.lt.s32.totalorder %s19, 1
        %s154 = scalar_select %p153, %s19, 1
        %s155 = scalar_lea.vmem %s0, %s154
        %p156 = pneg %p40
        %p157 = pneg %p37
        %s158 = sand.u32 %s53, 1
        %s159 = scalar_lea.sflag [#allocation3], %s158
        %s160 = sand.u32 %s53, 1
        %s161 = smul.addr %s160, 8
        %s162 = scalar_lea.vmem [#allocation2], %s161
        %p163 = pneg %p66
        %p164 = pneg %p63
        %p165 = pneg %p92
        %p166 = pneg %p89
        %s167 = sand.u32 %s79, 1
        %s168 = scalar_lea.sflag [#allocation4], %s167
        %s169 = sand.u32 %s79, 1
        %s170 = smul.addr %s169, 8
        %s171 = scalar_lea.vmem [#allocation5], %s170
        %p172 = scmp.lt.s32.totalorder %s19, 1
        %s173 = scalar_select %p172, %s19, 1
        %s174 = scalar_lea.vmem %s0, %s173
        %v175 = vld [vmem:[%s147] sm:$0xff]
        %v176 = vld [vmem:[%s174] sm:$0x1]
        %v178 = vperm.slane %v176, 0
        %179 = vset.pattern.permute.xlu0 0
        %180 = vperm.xlu0 %179, %v178
        %v181 = vpop.permute.xlu0 %180
        %v183 = vmul.f32 %v175, %v181
        %184 = vst [vmem:[%s171] sm:$0xff] %v183
        %s185 = sand.u32 %s79, 1
        %s186 = scalar_lea.sflag [#allocation4], %s185
        %s187 = sand.u32 %s79, 1
        %s188 = smul.addr %s187, 8
        %s189 = scalar_lea.vmem [#allocation5], %s188
        // Predicated region
        $region33: #{tpu_custom_call.1} parent=27 // pred_check
          %p190 = pneg %p89
        $region34: #{tpu_custom_call.1} parent=27 // pred_check_branch
          %192 = sbr.rel (%p190) target = $region36
        $region35: #{tpu_custom_call.1} parent=27 // pred_region
          %194 = vsyncadd %s186, 0
          %s195 = smul.addr %s19, 8
          %s196 = scalar_lea.hbm %s2, %s195
          %s198 = sshll.u32 %s189, 4
          %s199 = int_to_ptr.vmem [resolvable:$true] %s198
          %s200 = sshll.u32 %s196, 4
          %s201 = int_to_ptr.hbm [resolvable:$true] %s200
          %203 = dma.vmem_to_hbm [thread:$0]  %s199, 128, %s201, %s186
        $region36: #{tpu_custom_call.1} parent=27 // pred_fallthru
          _
      $region28: #{tpu_custom_call.1} parent=5 // pred_fallthru
        _
      %p204 = scmp.le.s32.totalorder 2, %s14
      // Predicated region
      $region37: #{tpu_custom_call.1} parent=5 // pred_check
        %p205 = pneg %p204
      $region38: #{tpu_custom_call.1} parent=5 // pred_check_branch
        %207 = sbr.rel (%p205) target = $region40
      $region39: #{tpu_custom_call.1} parent=5 // pred_region
        %s208 = ssub.s32 %s14, 2
        // Predicated region
        $region41: #{tpu_custom_call.1} parent=39 // pred_check
          %p209 = pneg %p95
        $region42: #{tpu_custom_call.1} parent=39 // pred_check_branch
          %211 = sbr.rel (%p209) target = $region44
        $region43: #{tpu_custom_call.1} parent=39 // pred_region
          %s212 = sand.u32 %s80, 1
          %s213 = scalar_lea.sflag [#allocation4], %s212
          %s214 = sand.u32 %s80, 1
          %s215 = smul.addr %s214, 8
          %s216 = scalar_lea.vmem [#allocation5], %s215
          %218 = dma.done %s213, 128
        $region44: #{tpu_custom_call.1} parent=39 // pred_fallthru
          _
      $region40: #{tpu_custom_call.1} parent=5 // pred_fallthru
        _
    $region6: #{tpu_custom_call.1} parent=1 // loop_footer
      %s18 = sadd.s32 1, %s14
    $region7: #{tpu_custom_call.1} parent=1 // loop_footer_branch
      %13 = sbr.rel target = $region3
    $region8: #{tpu_custom_call.1} parent=1 // loop_exit
      _
    %219 = vsyncpa [#allocation3], 1
    %s220 = scalar_lea.sflag [#allocation3], 1
    %221 = vsyncpa %s220, 1
    %222 = vsyncpa [#allocation4], 1
    %s223 = scalar_lea.sflag [#allocation4], 1
    %224 = vsyncpa %s223, 1

</llo_original>
